<compile_context>
chip_gen: v6e
topology: v6e:2x2x1
jax: 0.10.0
libtpu: 0.0.40
codegen_flags: <defaults>
</compile_context>

<pallas_src>
import math

import jax
import jax.numpy as jnp
from jax.experimental import pallas as pl
from jax.experimental.pallas import tpu as pltpu

_MIB = 1024 * 1024


# ----------------------------- kernel ---------------------------------------
def temporal_attention_kernel(x_ref, w_ref, out_ref):
    """One batch tile: x (TB, T, D), w (1, D) -> out (TB, D)."""
    x = x_ref[...]                                        # (TB, T, D) f32
    w = w_ref[...]                                        # (1, D) -> broadcasts over (TB, T, D)

    # Attention logits: dot(x[b, t, :], w) per (batch, time) -> (TB, T, 1).
    # The Linear bias is an exact no-op under the time softmax and is omitted.
    s = jnp.sum(x * w, axis=-1, keepdims=True)            # (TB, T, 1)

    # Numerically-stable softmax over the time axis (axis=1).
    m = jnp.max(s, axis=1, keepdims=True)                 # (TB, 1, 1)
    e = jnp.exp(s - m)                                    # (TB, T, 1)
    p = e / jnp.sum(e, axis=1, keepdims=True)             # (TB, T, 1); exact divide
                                                          # (approx reciprocal can
                                                          # exceed 1e-4 tolerance)

    # Weighted time sum: (TB, T, D) * (TB, T, 1) -> sum over T -> (TB, D).
    out_ref[...] = jnp.sum(x * p, axis=1).astype(out_ref.dtype)


# ----------------------------- tiling policy ---------------------------------
def _vmem_capacity_bytes():
    try:
        return int(pltpu.get_tpu_info().vmem_capacity_bytes)
    except Exception:
        return 64 * _MIB           # conservative: v7x has the smallest VMEM


def _num_tensorcores():
    try:
        dev = jax.devices()[0]
        kind = str(getattr(dev, "device_kind", "")).lower()
        if "v7" in kind:
            return 2               # v7x: 2 TensorCores share the chip's HBM
        return max(1, int(getattr(dev, "num_cores", 1) or 1))
    except Exception:
        return 1


def _choose_tiling(B, T, D, itemsize):
    """VMEM-byte-budget tile picker. Returns (tile_b, padded_B)."""
    vmem_cap = _vmem_capacity_bytes()
    # Target x-block bytes: double-buffered by the pipeline, plus output blocks
    # and headroom, must stay well inside the smallest part's VMEM (64 MiB v7x).
    target_block_bytes = min(8 * _MIB, vmem_cap // 8)
    row_bytes = max(1, T * D * itemsize)
    tile_b = max(8, (target_block_bytes // row_bytes) // 8 * 8)

    # v7x megacore: keep >= 2 grid steps per TensorCore so each core pipelines
    # its own DMA; on 1-TC parts (v5e/v6e) a single step avoids step overhead.
    n_tc = _num_tensorcores()
    if n_tc > 1 and B > 8:
        per_core_cap = max(8, (pl.cdiv(B, 2 * n_tc) // 8) * 8)
        tile_b = min(tile_b, per_core_cap)

    if tile_b >= B:
        return B, B                # whole batch in one block

    # Prefer a multiple-of-8 tile that divides B exactly (no padding); only
    # shrink down to half the budget tile before falling back to padding.
    t = tile_b
    while t >= max(8, tile_b // 2) and B % t != 0:
        t -= 8
    if t >= 8 and B % t == 0:
        return t, B

    # Pad the batch up to a tile multiple; padded rows produce finite values
    # (softmax of all-zero scores is uniform, weighted sum of zeros is zero)
    # and are sliced off in the wrapper.
    padded = pl.cdiv(B, tile_b) * tile_b
    return tile_b, padded


# ----------------------------- wrapper ---------------------------------------
def temporal_attention(x, w, b=None, *, tile_b=None):
    """x: (B, T, D); w: (1, D) = nn.Linear(D, 1).weight; b: (1,) = bias (unused:
    a constant shift of the logits is an exact no-op under softmax over time)."""
    del b  # exact no-op under the time softmax (kept in signature for fidelity)
    B, T, D = x.shape
    itemsize = jnp.dtype(x.dtype).itemsize

    if tile_b is None:
        tile_b, padded_B = _choose_tiling(B, T, D, itemsize)
    else:
        padded_B = pl.cdiv(B, tile_b) * tile_b

    x_in = x
    if padded_B != B:
        x_in = jnp.pad(x, ((0, padded_B - B), (0, 0), (0, 0)))

    grid = (padded_B // tile_b,)

    # Explicit scoped-VMEM limit sized to the double-buffered blocks + headroom.
    x_block_bytes = tile_b * T * D * itemsize
    out_block_bytes = tile_b * D * itemsize
    need = 2 * (x_block_bytes + out_block_bytes) + 2 * _MIB
    vmem_limit = max(need, 4 * _MIB)
    vmem_limit = int(min(vmem_limit, int(_vmem_capacity_bytes() * 0.9)))

    cost = pl.CostEstimate(
        flops=int(4 * B * T * D),              # score MACs + weighted-sum MACs
        transcendentals=int(B * T),            # one exp per (batch, time)
        bytes_accessed=int(itemsize * (B * T * D + B * D + D)),
    )

    out = pl.pallas_call(
        temporal_attention_kernel,
        out_shape=jax.ShapeDtypeStruct((padded_B, D), x.dtype),
        grid_spec=pltpu.PrefetchScalarGridSpec(
            num_scalar_prefetch=0,
            grid=grid,
            in_specs=[
                # Full (T, D) extent per batch tile: one contiguous HBM slab per
                # step; tiling T or D would fragment the DMA and break the
                # one-pass softmax over time.
                pl.BlockSpec((tile_b, T, D), lambda i: (i, 0, 0)),
                pl.BlockSpec((1, D), lambda i: (0, 0)),      # attn weight (broadcast)
            ],
            out_specs=pl.BlockSpec((tile_b, D), lambda i: (i, 0)),
        ),
        compiler_params=pltpu.CompilerParams(
            dimension_semantics=("parallel",),
            vmem_limit_bytes=vmem_limit,
        ),
        cost_estimate=cost,
    )(x_in, w)

    return out[:B] if padded_B != B else out


# ----------------------------- reference (pure JAX) ---------------------------
def reference(x, w, b):
    # Matches PyTorch exactly (including the bias); uses elementwise math so the
    # comparison is not polluted by XLA's default bf16 matmul precision on TPU.
    s = jnp.sum(x * w, axis=-1, keepdims=True) + b        # (B, T, 1)
    p = jax.nn.softmax(s, axis=1)
    return jnp.sum(x * p, axis=1)                          # (B, D)


# ----------------------------- main -------------------------------------------
if __name__ == "__main__":
    B, T, D = 16, 8, 32     # batch, time steps, feature dim (input_dim)

    key = jax.random.PRNGKey(0)
    k_x, k_w, k_b = jax.random.split(key, 3)

    x = jax.random.normal(k_x, (B, T, D), jnp.float32)
    bound = 1.0 / math.sqrt(D)                             # nn.Linear default init
    w = jax.random.uniform(k_w, (1, D), jnp.float32, -bound, bound)  # Linear(D,1).weight
    b = jax.random.uniform(k_b, (1,), jnp.float32, -bound, bound)    # Linear(D,1).bias

    out = jax.block_until_ready(temporal_attention(x, w, b))
    ref = jax.block_until_ready(reference(x, w, b))

    assert out.shape == (B, D)
    assert bool(jnp.allclose(out, ref, rtol=1e-4, atol=1e-4)), "mismatch vs JAX reference"

    print("KERNEL_OK")
</pallas_src>

<mosaic_0001>
module attributes {stable_mosaic.version = 11 : i64} {
  func.func @temporal_attention_kernel(%arg0: i32, %arg1: memref<16x8x32xf32, #tpu.memory_space<vmem>>, %arg2: memref<1x32xf32, #tpu.memory_space<vmem>>, %arg3: memref<16x32xf32, #tpu.memory_space<vmem>>) attributes {dimension_semantics = [#tpu.dimension_semantics<parallel>], iteration_bounds = array<i64: 1>, scalar_prefetch = 0 : i64, scratch_operands = 0 : i64, tpu.core_type = #tpu.core_type<tc>, window_params = [{transform_indices = @transform_0, window_bounds = array<i64: 16, 8, 32>}, {pipeline_mode = #tpu.pipeline_mode<synchronous>, transform_indices = @transform_1, window_bounds = array<i64: 1, 32>}, {transform_indices = @transform_2, window_bounds = array<i64: 16, 32>}]} {
    %c0 = arith.constant 0 : index
    %c0_0 = arith.constant 0 : index
    %c0_1 = arith.constant 0 : index
    %0 = vector.load %arg1[%c0, %c0_0, %c0_1] : memref<16x8x32xf32, #tpu.memory_space<vmem>>, vector<16x8x32xf32>
    %c0_2 = arith.constant 0 : index
    %c0_3 = arith.constant 0 : index
    %1 = vector.load %arg2[%c0_2, %c0_3] : memref<1x32xf32, #tpu.memory_space<vmem>>, vector<1x32xf32>
    %2 = vector.shape_cast %1 : vector<1x32xf32> to vector<1x1x32xf32>
    %3 = vector.broadcast %2 : vector<1x1x32xf32> to vector<16x8x32xf32>
    %4 = arith.mulf %0, %3 : vector<16x8x32xf32>
    %cst = arith.constant dense<0.000000e+00> : vector<16x8xf32>
    %5 = vector.multi_reduction <add>, %4, %cst [2] : vector<16x8x32xf32> to vector<16x8xf32>
    %6 = vector.shape_cast %5 : vector<16x8xf32> to vector<16x8x1xf32>
    %cst_4 = arith.constant dense<0xFF800000> : vector<16x1xf32>
    %7 = vector.multi_reduction <maximumf>, %6, %cst_4 [1] : vector<16x8x1xf32> to vector<16x1xf32>
    %8 = vector.shape_cast %7 : vector<16x1xf32> to vector<16x1x1xf32>
    %9 = vector.broadcast %8 : vector<16x1x1xf32> to vector<16x8x1xf32>
    %10 = arith.subf %6, %9 : vector<16x8x1xf32>
    %11 = math.exp %10 : vector<16x8x1xf32>
    %cst_5 = arith.constant dense<0.000000e+00> : vector<16x1xf32>
    %12 = vector.multi_reduction <add>, %11, %cst_5 [1] : vector<16x8x1xf32> to vector<16x1xf32>
    %13 = vector.shape_cast %12 : vector<16x1xf32> to vector<16x1x1xf32>
    %14 = vector.broadcast %13 : vector<16x1x1xf32> to vector<16x8x1xf32>
    %15 = arith.divf %11, %14 : vector<16x8x1xf32>
    %16 = vector.broadcast %15 : vector<16x8x1xf32> to vector<16x8x32xf32>
    %17 = arith.mulf %0, %16 : vector<16x8x32xf32>
    %cst_6 = arith.constant dense<0.000000e+00> : vector<16x32xf32>
    %18 = vector.multi_reduction <add>, %17, %cst_6 [1] : vector<16x8x32xf32> to vector<16x32xf32>
    %c0_7 = arith.constant 0 : index
    %c0_8 = arith.constant 0 : index
    %19 = vector.load %arg3[%c0_7, %c0_8] : memref<16x32xf32, #tpu.memory_space<vmem>>, vector<16x32xf32>
    tpu.vector_store %arg3[%c0_7, %c0_8], %18 {strides = array<i32>} : memref<16x32xf32, #tpu.memory_space<vmem>>, vector<16x32xf32>,
    return
  }
  func.func @transform_0(%arg0: i32) -> (i32, i32, i32) {
    %c0_i32 = arith.constant 0 : i32
    %c0_i32_0 = arith.constant 0 : i32
    %c0_i32_1 = arith.constant 0 : i32
    return %arg0, %c0_i32, %c0_i32_0 : i32, i32, i32
  }
  func.func @transform_1(%arg0: i32) -> (i32, i32) {
    %c0_i32 = arith.constant 0 : i32
    %c0_i32_0 = arith.constant 0 : i32
    %c0_i32_1 = arith.constant 0 : i32
    return %c0_i32, %c0_i32_0 : i32, i32
  }
  func.func @transform_2(%arg0: i32) -> (i32, i32) {
    %c0_i32 = arith.constant 0 : i32
    %c0_i32_0 = arith.constant 0 : i32
    return %arg0, %c0_i32 : i32, i32
  }
}

</mosaic_0001>

<llo_original>
// kernel: tpu_custom_call.1
$region0: #{tpu_custom_call.1}
  #allocation0 [shape = 'u32[]', space=smem, size = 0x4, offset = 0x4, fixed_abs, tag = 'smem constant byte address 0x4 - core index']
  #allocation1 [shape = 'u32[144,128]{1,0:T(1,128)}', space=vmem, size = 0x12000, scoped, tag = 'internal scratch']
  %s0 = inlined_call_operand.hbm [shape: f32[16,8,32], index: 0, kind: input, shape index: {}]
  %s1 = inlined_call_operand.vmem [shape: f32[1,32], index: 1, kind: input, shape index: {}]
  %s2 = inlined_call_operand.hbm [shape: f32[16,32], index: 2, kind: output, shape index: {}]
  %s3 = sld [smem:[#allocation0]]
  $region22: #{tpu_custom_call.1} parent=0
    _
  %s5 = ssub.s32 1, %s3
  %s6 = scalar_select 0, %s5, %s3
  $region1: #{tpu_custom_call.1} parent=0
    #allocation2 [shape = 'u8[65536]{0}', space=vmem, size = 0x10000, scoped, tag = 'input window, operand 0, single buffered']
    #allocation3 [shape = 's32[1]{0}', space=sflag, size = 0x4, scoped, tag = 'scoped memory for tpu_custom_call.1']
    #allocation4 [shape = 's32[1]{0}', space=sflag, size = 0x4, scoped, tag = 'scoped memory for tpu_custom_call.1']
    #allocation5 [shape = 'u8[8192]{0}', space=vmem, size = 0x2000, scoped, tag = 'output window, operand 0, single buffered']
    %7 = vsyncpa [#allocation3], 0
    %8 = vsyncpa [#allocation4], 0
    // Predicated region
    $region2: #{tpu_custom_call.1} parent=1 // pred_check
      _
    $region3: #{tpu_custom_call.1} parent=1 // pred_check_branch
      %10 = sbr.rel (0) target = $region5
    $region4: #{tpu_custom_call.1} parent=1 // pred_region
      %s12 = ssub.s32 2048, 2048
      %13 = vsyncadd [#allocation3], %s12
      %s14 = sshll.u32 [#allocation2], 4
      %s15 = int_to_ptr.vmem [resolvable:$true] %s14
      %20 = dma.hbm_to_vmem [thread:$0]  %s0, 2048, %s15, [#allocation3], 128, 128, 8
    $region5: #{tpu_custom_call.1} parent=1 // pred_fallthru
      _
    // Predicated region
    $region6: #{tpu_custom_call.1} parent=1 // pred_check
      _
    $region7: #{tpu_custom_call.1} parent=1 // pred_check_branch
      %22 = sbr.rel (0) target = $region9
    $region8: #{tpu_custom_call.1} parent=1 // pred_region
      _
    $region9: #{tpu_custom_call.1} parent=1 // pred_fallthru
      _
    // Predicated region
    $region10: #{tpu_custom_call.1} parent=1 // pred_check
      _
    $region11: #{tpu_custom_call.1} parent=1 // pred_check_branch
      %24 = sbr.rel (0) target = $region13
    $region12: #{tpu_custom_call.1} parent=1 // pred_region
      %25 = dma.done [#allocation3], 2048
    $region13: #{tpu_custom_call.1} parent=1 // pred_fallthru
      _
    %v26 = vld [vmem:[#allocation2] sm:$0xff]
    %v27 = vld [vmem:[#allocation2 + $0x8] sm:$0xff]
    %v28 = vld [vmem:[#allocation2 + $0x10] sm:$0xff]
    %v29 = vld [vmem:[#allocation2 + $0x18] sm:$0xff]
    %v30 = vld [vmem:[#allocation2 + $0x20] sm:$0xff]
    %v31 = vld [vmem:[#allocation2 + $0x28] sm:$0xff]
    %v32 = vld [vmem:[#allocation2 + $0x30] sm:$0xff]
    %v33 = vld [vmem:[#allocation2 + $0x38] sm:$0xff]
    %v34 = vld [vmem:[#allocation2 + $0x40] sm:$0xff]
    %v35 = vld [vmem:[#allocation2 + $0x48] sm:$0xff]
    %v36 = vld [vmem:[#allocation2 + $0x50] sm:$0xff]
    %v37 = vld [vmem:[#allocation2 + $0x58] sm:$0xff]
    %v38 = vld [vmem:[#allocation2 + $0x60] sm:$0xff]
    %v39 = vld [vmem:[#allocation2 + $0x68] sm:$0xff]
    %v40 = vld [vmem:[#allocation2 + $0x70] sm:$0xff]
    %v41 = vld [vmem:[#allocation2 + $0x78] sm:$0xff]
    %v42 = vld [vmem:[%s1] sm:$0x1]
    %v44 = vlaneseq
    %v45 = vshrl.u32 %v44, 7
    %v46 = vsub.s32 0, %v45
    %v47 = vrot.slane %v42, %v46
    %v49 = vmul.f32 %v26, %v47
    %v50 = vmul.f32 %v27, %v47
    %v51 = vmul.f32 %v28, %v47
    %v52 = vmul.f32 %v29, %v47
    %v53 = vmul.f32 %v30, %v47
    %v54 = vmul.f32 %v31, %v47
    %v55 = vmul.f32 %v32, %v47
    %v56 = vmul.f32 %v33, %v47
    %v57 = vmul.f32 %v34, %v47
    %v58 = vmul.f32 %v35, %v47
    %v59 = vmul.f32 %v36, %v47
    %v60 = vmul.f32 %v37, %v47
    %v61 = vmul.f32 %v38, %v47
    %v62 = vmul.f32 %v39, %v47
    %v63 = vmul.f32 %v40, %v47
    %v64 = vmul.f32 %v41, %v47
    %vm65 = vcmask 261120
    %v66 = vsel %vm65, %v49, 0.0
    %67 = vadd.xlane.f32.xlu0 %v66
    %v68 = vpop.xlane.xlu0 %67
    %v69 = vsel %vm65, %v50, 0.0
    %70 = vadd.xlane.f32.xlu0 %v69
    %v71 = vpop.xlane.xlu0 %70
    %v72 = vsel %vm65, %v51, 0.0
    %73 = vadd.xlane.f32.xlu0 %v72
    %v74 = vpop.xlane.xlu0 %73
    %v75 = vsel %vm65, %v52, 0.0
    %76 = vadd.xlane.f32.xlu0 %v75
    %v77 = vpop.xlane.xlu0 %76
    %v78 = vsel %vm65, %v53, 0.0
    %79 = vadd.xlane.f32.xlu0 %v78
    %v80 = vpop.xlane.xlu0 %79
    %v81 = vsel %vm65, %v54, 0.0
    %82 = vadd.xlane.f32.xlu0 %v81
    %v83 = vpop.xlane.xlu0 %82
    %v84 = vsel %vm65, %v55, 0.0
    %85 = vadd.xlane.f32.xlu0 %v84
    %v86 = vpop.xlane.xlu0 %85
    %v87 = vsel %vm65, %v56, 0.0
    %88 = vadd.xlane.f32.xlu0 %v87
    %v89 = vpop.xlane.xlu0 %88
    %v90 = vsel %vm65, %v57, 0.0
    %91 = vadd.xlane.f32.xlu0 %v90
    %v92 = vpop.xlane.xlu0 %91
    %v93 = vsel %vm65, %v58, 0.0
    %94 = vadd.xlane.f32.xlu0 %v93
    %v95 = vpop.xlane.xlu0 %94
    %v96 = vsel %vm65, %v59, 0.0
    %97 = vadd.xlane.f32.xlu0 %v96
    %v98 = vpop.xlane.xlu0 %97
    %v99 = vsel %vm65, %v60, 0.0
    %100 = vadd.xlane.f32.xlu0 %v99
    %v101 = vpop.xlane.xlu0 %100
    %v102 = vsel %vm65, %v61, 0.0
    %103 = vadd.xlane.f32.xlu0 %v102
    %v104 = vpop.xlane.xlu0 %103
    %v105 = vsel %vm65, %v62, 0.0
    %106 = vadd.xlane.f32.xlu0 %v105
    %v107 = vpop.xlane.xlu0 %106
    %v108 = vsel %vm65, %v63, 0.0
    %109 = vadd.xlane.f32.xlu0 %v108
    %v110 = vpop.xlane.xlu0 %109
    %v111 = vsel %vm65, %v64, 0.0
    %112 = vadd.xlane.f32.xlu0 %v111
    %v113 = vpop.xlane.xlu0 %112
    %v114 = vrot.slane %v68, 4
    %v115 = vmax.f32 %v68, %v114
    %v116 = vrot.slane %v115, 2
    %v117 = vmax.f32 %v115, %v116
    %v118 = vrot.slane %v117, 1
    %v119 = vmax.f32 %v117, %v118
    %v120 = vrot.slane %v71, 4
    %v121 = vmax.f32 %v71, %v120
    %v122 = vrot.slane %v121, 2
    %v123 = vmax.f32 %v121, %v122
    %v124 = vrot.slane %v123, 1
    %v125 = vmax.f32 %v123, %v124
    %v126 = vrot.slane %v74, 4
    %v127 = vmax.f32 %v74, %v126
    %v128 = vrot.slane %v127, 2
    %v129 = vmax.f32 %v127, %v128
    %v130 = vrot.slane %v129, 1
    %v131 = vmax.f32 %v129, %v130
    %v132 = vrot.slane %v77, 4
    %v133 = vmax.f32 %v77, %v132
    %v134 = vrot.slane %v133, 2
    %v135 = vmax.f32 %v133, %v134
    %v136 = vrot.slane %v135, 1
    %v137 = vmax.f32 %v135, %v136
    %v138 = vrot.slane %v80, 4
    %v139 = vmax.f32 %v80, %v138
    %v140 = vrot.slane %v139, 2
    %v141 = vmax.f32 %v139, %v140
    %v142 = vrot.slane %v141, 1
    %v143 = vmax.f32 %v141, %v142
    %v144 = vrot.slane %v83, 4
    %v145 = vmax.f32 %v83, %v144
    %v146 = vrot.slane %v145, 2
    %v147 = vmax.f32 %v145, %v146
    %v148 = vrot.slane %v147, 1
    %v149 = vmax.f32 %v147, %v148
    %v150 = vrot.slane %v86, 4
    %v151 = vmax.f32 %v86, %v150
    %v152 = vrot.slane %v151, 2
    %v153 = vmax.f32 %v151, %v152
    %v154 = vrot.slane %v153, 1
    %v155 = vmax.f32 %v153, %v154
    %v156 = vrot.slane %v89, 4
    %v157 = vmax.f32 %v89, %v156
    %v158 = vrot.slane %v157, 2
    %v159 = vmax.f32 %v157, %v158
    %v160 = vrot.slane %v159, 1
    %v161 = vmax.f32 %v159, %v160
    %v162 = vrot.slane %v92, 4
    %v163 = vmax.f32 %v92, %v162
    %v164 = vrot.slane %v163, 2
    %v165 = vmax.f32 %v163, %v164
    %v166 = vrot.slane %v165, 1
    %v167 = vmax.f32 %v165, %v166
    %v168 = vrot.slane %v95, 4
    %v169 = vmax.f32 %v95, %v168
    %v170 = vrot.slane %v169, 2
    %v171 = vmax.f32 %v169, %v170
    %v172 = vrot.slane %v171, 1
    %v173 = vmax.f32 %v171, %v172
    %v174 = vrot.slane %v98, 4
    %v175 = vmax.f32 %v98, %v174
    %v176 = vrot.slane %v175, 2
    %v177 = vmax.f32 %v175, %v176
    %v178 = vrot.slane %v177, 1
    %v179 = vmax.f32 %v177, %v178
    %v180 = vrot.slane %v101, 4
    %v181 = vmax.f32 %v101, %v180
    %v182 = vrot.slane %v181, 2
    %v183 = vmax.f32 %v181, %v182
    %v184 = vrot.slane %v183, 1
    %v185 = vmax.f32 %v183, %v184
    %v186 = vrot.slane %v104, 4
    %v187 = vmax.f32 %v104, %v186
    %v188 = vrot.slane %v187, 2
    %v189 = vmax.f32 %v187, %v188
    %v190 = vrot.slane %v189, 1
    %v191 = vmax.f32 %v189, %v190
    %v192 = vrot.slane %v107, 4
    %v193 = vmax.f32 %v107, %v192
    %v194 = vrot.slane %v193, 2
    %v195 = vmax.f32 %v193, %v194
    %v196 = vrot.slane %v195, 1
    %v197 = vmax.f32 %v195, %v196
    %v198 = vrot.slane %v110, 4
    %v199 = vmax.f32 %v110, %v198
    %v200 = vrot.slane %v199, 2
    %v201 = vmax.f32 %v199, %v200
    %v202 = vrot.slane %v201, 1
    %v203 = vmax.f32 %v201, %v202
    %v204 = vrot.slane %v113, 4
    %v205 = vmax.f32 %v113, %v204
    %v206 = vrot.slane %v205, 2
    %v207 = vmax.f32 %v205, %v206
    %v208 = vrot.slane %v207, 1
    %v209 = vmax.f32 %v207, %v208
    %v210 = vsub.f32 %v68, %v119
    %v211 = vsub.f32 %v71, %v125
    %v212 = vsub.f32 %v74, %v131
    %v213 = vsub.f32 %v77, %v137
    %v214 = vsub.f32 %v80, %v143
    %v215 = vsub.f32 %v83, %v149
    %v216 = vsub.f32 %v86, %v155
    %v217 = vsub.f32 %v89, %v161
    %v218 = vsub.f32 %v92, %v167
    %v219 = vsub.f32 %v95, %v173
    %v220 = vsub.f32 %v98, %v179
    %v221 = vsub.f32 %v101, %v185
    %v222 = vsub.f32 %v104, %v191
    %v223 = vsub.f32 %v107, %v197
    %v224 = vsub.f32 %v110, %v203
    %v225 = vsub.f32 %v113, %v209
    %v226 = vmul.f32 %v210, 1.442695
    %v227 = vpow.pop %v226
    %v228 = vmul.f32 %v211, 1.442695
    %v229 = vpow.pop %v228
    %v230 = vmul.f32 %v212, 1.442695
    %v231 = vpow.pop %v230
    %v232 = vmul.f32 %v213, 1.442695
    %v233 = vpow.pop %v232
    %v234 = vmul.f32 %v214, 1.442695
    %v235 = vpow.pop %v234
    %v236 = vmul.f32 %v215, 1.442695
    %v237 = vpow.pop %v236
    %v238 = vmul.f32 %v216, 1.442695
    %v239 = vpow.pop %v238
    %v240 = vmul.f32 %v217, 1.442695
    %v241 = vpow.pop %v240
    %v242 = vmul.f32 %v218, 1.442695
    %v243 = vpow.pop %v242
    %v244 = vmul.f32 %v219, 1.442695
    %v245 = vpow.pop %v244
    %v246 = vmul.f32 %v220, 1.442695
    %v247 = vpow.pop %v246
    %v248 = vmul.f32 %v221, 1.442695
    %v249 = vpow.pop %v248
    %v250 = vmul.f32 %v222, 1.442695
    %v251 = vpow.pop %v250
    %v252 = vmul.f32 %v223, 1.442695
    %v253 = vpow.pop %v252
    %v254 = vmul.f32 %v224, 1.442695
    %v255 = vpow.pop %v254
    %v256 = vmul.f32 %v225, 1.442695
    %v257 = vpow.pop %v256
    %v258 = vrot.slane %v227, 4
    %v259 = vadd.f32 %v227, %v258
    %v260 = vrot.slane %v259, 2
    %v261 = vadd.f32 %v259, %v260
    %v262 = vrot.slane %v261, 1
    %v263 = vadd.f32 %v261, %v262
    %v264 = vrot.slane %v229, 4
    %v265 = vadd.f32 %v229, %v264
    %v266 = vrot.slane %v265, 2
    %v267 = vadd.f32 %v265, %v266
    %v268 = vrot.slane %v267, 1
    %v269 = vadd.f32 %v267, %v268
    %v270 = vrot.slane %v231, 4
    %v271 = vadd.f32 %v231, %v270
    %v272 = vrot.slane %v271, 2
    %v273 = vadd.f32 %v271, %v272
    %v274 = vrot.slane %v273, 1
    %v275 = vadd.f32 %v273, %v274
    %v276 = vrot.slane %v233, 4
    %v277 = vadd.f32 %v233, %v276
    %v278 = vrot.slane %v277, 2
    %v279 = vadd.f32 %v277, %v278
    %v280 = vrot.slane %v279, 1
    %v281 = vadd.f32 %v279, %v280
    %v282 = vrot.slane %v235, 4
    %v283 = vadd.f32 %v235, %v282
    %v284 = vrot.slane %v283, 2
    %v285 = vadd.f32 %v283, %v284
    %v286 = vrot.slane %v285, 1
    %v287 = vadd.f32 %v285, %v286
    %v288 = vrot.slane %v237, 4
    %v289 = vadd.f32 %v237, %v288
    %v290 = vrot.slane %v289, 2
    %v291 = vadd.f32 %v289, %v290
    %v292 = vrot.slane %v291, 1
    %v293 = vadd.f32 %v291, %v292
    %v294 = vrot.slane %v239, 4
    %v295 = vadd.f32 %v239, %v294
    %v296 = vrot.slane %v295, 2
    %v297 = vadd.f32 %v295, %v296
    %v298 = vrot.slane %v297, 1
    %v299 = vadd.f32 %v297, %v298
    %v300 = vrot.slane %v241, 4
    %v301 = vadd.f32 %v241, %v300
    %v302 = vrot.slane %v301, 2
    %v303 = vadd.f32 %v301, %v302
    %v304 = vrot.slane %v303, 1
    %v305 = vadd.f32 %v303, %v304
    %v306 = vrot.slane %v243, 4
    %v307 = vadd.f32 %v243, %v306
    %v308 = vrot.slane %v307, 2
    %v309 = vadd.f32 %v307, %v308
    %v310 = vrot.slane %v309, 1
    %v311 = vadd.f32 %v309, %v310
    %v312 = vrot.slane %v245, 4
    %v313 = vadd.f32 %v245, %v312
    %v314 = vrot.slane %v313, 2
    %v315 = vadd.f32 %v313, %v314
    %v316 = vrot.slane %v315, 1
    %v317 = vadd.f32 %v315, %v316
    %v318 = vrot.slane %v247, 4
    %v319 = vadd.f32 %v247, %v318
    %v320 = vrot.slane %v319, 2
    %v321 = vadd.f32 %v319, %v320
    %v322 = vrot.slane %v321, 1
    %v323 = vadd.f32 %v321, %v322
    %v324 = vrot.slane %v249, 4
    %v325 = vadd.f32 %v249, %v324
    %v326 = vrot.slane %v325, 2
    %v327 = vadd.f32 %v325, %v326
    %v328 = vrot.slane %v327, 1
    %v329 = vadd.f32 %v327, %v328
    %v330 = vrot.slane %v251, 4
    %v331 = vadd.f32 %v251, %v330
    %v332 = vrot.slane %v331, 2
    %v333 = vadd.f32 %v331, %v332
    %v334 = vrot.slane %v333, 1
    %v335 = vadd.f32 %v333, %v334
    %v336 = vrot.slane %v253, 4
    %v337 = vadd.f32 %v253, %v336
    %v338 = vrot.slane %v337, 2
    %v339 = vadd.f32 %v337, %v338
    %v340 = vrot.slane %v339, 1
    %v341 = vadd.f32 %v339, %v340
    %v342 = vrot.slane %v255, 4
    %v343 = vadd.f32 %v255, %v342
    %v344 = vrot.slane %v343, 2
    %v345 = vadd.f32 %v343, %v344
    %v346 = vrot.slane %v345, 1
    %v347 = vadd.f32 %v345, %v346
    %v348 = vrot.slane %v257, 4
    %v349 = vadd.f32 %v257, %v348
    %v350 = vrot.slane %v349, 2
    %v351 = vadd.f32 %v349, %v350
    %v352 = vrot.slane %v351, 1
    %v353 = vadd.f32 %v351, %v352
    %v354 = vrcp.pop %v263
    %v355 = vmul.f32 %v227, %v354
    %v356 = vrcp.pop %v269
    %v357 = vmul.f32 %v229, %v356
    %v358 = vrcp.pop %v275
    %v359 = vmul.f32 %v231, %v358
    %v360 = vrcp.pop %v281
    %v361 = vmul.f32 %v233, %v360
    %v362 = vrcp.pop %v287
    %v363 = vmul.f32 %v235, %v362
    %v364 = vrcp.pop %v293
    %v365 = vmul.f32 %v237, %v364
    %v366 = vrcp.pop %v299
    %v367 = vmul.f32 %v239, %v366
    %v368 = vrcp.pop %v305
    %v369 = vmul.f32 %v241, %v368
    %v370 = vrcp.pop %v311
    %v371 = vmul.f32 %v243, %v370
    %v372 = vrcp.pop %v317
    %v373 = vmul.f32 %v245, %v372
    %v374 = vrcp.pop %v323
    %v375 = vmul.f32 %v247, %v374
    %v376 = vrcp.pop %v329
    %v377 = vmul.f32 %v249, %v376
    %v378 = vrcp.pop %v335
    %v379 = vmul.f32 %v251, %v378
    %v380 = vrcp.pop %v341
    %v381 = vmul.f32 %v253, %v380
    %v382 = vrcp.pop %v347
    %v383 = vmul.f32 %v255, %v382
    %v384 = vrcp.pop %v353
    %v385 = vmul.f32 %v257, %v384
    %v386 = vmul.f32 %v26, %v355
    %v387 = vmul.f32 %v27, %v357
    %v388 = vmul.f32 %v28, %v359
    %v389 = vmul.f32 %v29, %v361
    %v390 = vmul.f32 %v30, %v363
    %v391 = vmul.f32 %v31, %v365
    %v392 = vmul.f32 %v32, %v367
    %v393 = vmul.f32 %v33, %v369
    %v394 = vmul.f32 %v34, %v371
    %v395 = vmul.f32 %v35, %v373
    %v396 = vmul.f32 %v36, %v375
    %v397 = vmul.f32 %v37, %v377
    %v398 = vmul.f32 %v38, %v379
    %v399 = vmul.f32 %v39, %v381
    %v400 = vmul.f32 %v40, %v383
    %v401 = vmul.f32 %v41, %v385
    %v402 = vsel %vm65, %v386, 0.0
    %v403 = vrot.slane %v402, 4
    %v404 = vadd.f32 %v402, %v403
    %v405 = vrot.slane %v404, 2
    %v406 = vadd.f32 %v404, %v405
    %v407 = vrot.slane %v406, 1
    %v408 = vadd.f32 %v406, %v407
    %v409 = vsel %vm65, %v387, 0.0
    %v410 = vrot.slane %v409, 4
    %v411 = vadd.f32 %v409, %v410
    %v412 = vrot.slane %v411, 2
    %v413 = vadd.f32 %v411, %v412
    %v414 = vrot.slane %v413, 1
    %v415 = vadd.f32 %v413, %v414
    %v416 = vsel %vm65, %v388, 0.0
    %v417 = vrot.slane %v416, 4
    %v418 = vadd.f32 %v416, %v417
    %v419 = vrot.slane %v418, 2
    %v420 = vadd.f32 %v418, %v419
    %v421 = vrot.slane %v420, 1
    %v422 = vadd.f32 %v420, %v421
    %v423 = vsel %vm65, %v389, 0.0
    %v424 = vrot.slane %v423, 4
    %v425 = vadd.f32 %v423, %v424
    %v426 = vrot.slane %v425, 2
    %v427 = vadd.f32 %v425, %v426
    %v428 = vrot.slane %v427, 1
    %v429 = vadd.f32 %v427, %v428
    %v430 = vsel %vm65, %v390, 0.0
    %v431 = vrot.slane %v430, 4
    %v432 = vadd.f32 %v430, %v431
    %v433 = vrot.slane %v432, 2
    %v434 = vadd.f32 %v432, %v433
    %v435 = vrot.slane %v434, 1
    %v436 = vadd.f32 %v434, %v435
    %v437 = vsel %vm65, %v391, 0.0
    %v438 = vrot.slane %v437, 4
    %v439 = vadd.f32 %v437, %v438
    %v440 = vrot.slane %v439, 2
    %v441 = vadd.f32 %v439, %v440
    %v442 = vrot.slane %v441, 1
    %v443 = vadd.f32 %v441, %v442
    %v444 = vsel %vm65, %v392, 0.0
    %v445 = vrot.slane %v444, 4
    %v446 = vadd.f32 %v444, %v445
    %v447 = vrot.slane %v446, 2
    %v448 = vadd.f32 %v446, %v447
    %v449 = vrot.slane %v448, 1
    %v450 = vadd.f32 %v448, %v449
    %v451 = vsel %vm65, %v393, 0.0
    %v452 = vrot.slane %v451, 4
    %v453 = vadd.f32 %v451, %v452
    %v454 = vrot.slane %v453, 2
    %v455 = vadd.f32 %v453, %v454
    %v456 = vrot.slane %v455, 1
    %v457 = vadd.f32 %v455, %v456
    %v458 = vsel %vm65, %v394, 0.0
    %v459 = vrot.slane %v458, 4
    %v460 = vadd.f32 %v458, %v459
    %v461 = vrot.slane %v460, 2
    %v462 = vadd.f32 %v460, %v461
    %v463 = vrot.slane %v462, 1
    %v464 = vadd.f32 %v462, %v463
    %v465 = vsel %vm65, %v395, 0.0
    %v466 = vrot.slane %v465, 4
    %v467 = vadd.f32 %v465, %v466
    %v468 = vrot.slane %v467, 2
    %v469 = vadd.f32 %v467, %v468
    %v470 = vrot.slane %v469, 1
    %v471 = vadd.f32 %v469, %v470
    %v472 = vsel %vm65, %v396, 0.0
    %v473 = vrot.slane %v472, 4
    %v474 = vadd.f32 %v472, %v473
    %v475 = vrot.slane %v474, 2
    %v476 = vadd.f32 %v474, %v475
    %v477 = vrot.slane %v476, 1
    %v478 = vadd.f32 %v476, %v477
    %v479 = vsel %vm65, %v397, 0.0
    %v480 = vrot.slane %v479, 4
    %v481 = vadd.f32 %v479, %v480
    %v482 = vrot.slane %v481, 2
    %v483 = vadd.f32 %v481, %v482
    %v484 = vrot.slane %v483, 1
    %v485 = vadd.f32 %v483, %v484
    %v486 = vsel %vm65, %v398, 0.0
    %v487 = vrot.slane %v486, 4
    %v488 = vadd.f32 %v486, %v487
    %v489 = vrot.slane %v488, 2
    %v490 = vadd.f32 %v488, %v489
    %v491 = vrot.slane %v490, 1
    %v492 = vadd.f32 %v490, %v491
    %v493 = vsel %vm65, %v399, 0.0
    %v494 = vrot.slane %v493, 4
    %v495 = vadd.f32 %v493, %v494
    %v496 = vrot.slane %v495, 2
    %v497 = vadd.f32 %v495, %v496
    %v498 = vrot.slane %v497, 1
    %v499 = vadd.f32 %v497, %v498
    %v500 = vsel %vm65, %v400, 0.0
    %v501 = vrot.slane %v500, 4
    %v502 = vadd.f32 %v500, %v501
    %v503 = vrot.slane %v502, 2
    %v504 = vadd.f32 %v502, %v503
    %v505 = vrot.slane %v504, 1
    %v506 = vadd.f32 %v504, %v505
    %v507 = vsel %vm65, %v401, 0.0
    %v508 = vrot.slane %v507, 4
    %v509 = vadd.f32 %v507, %v508
    %v510 = vrot.slane %v509, 2
    %v511 = vadd.f32 %v509, %v510
    %v512 = vrot.slane %v511, 1
    %v513 = vadd.f32 %v511, %v512
    %vm530 = vcmask 1041409
    %v531 = vsel %vm530, %v415, %v408
    %vm532 = vcmask 1042434
    %v533 = vsel %vm532, %v422, %v531
    %vm534 = vcmask 1043459
    %v535 = vsel %vm534, %v429, %v533
    %vm536 = vcmask 1044484
    %v537 = vsel %vm536, %v436, %v535
    %vm538 = vcmask 1045509
    %v539 = vsel %vm538, %v443, %v537
    %vm540 = vcmask 1046534
    %v541 = vsel %vm540, %v450, %v539
    %vm542 = vcmask 1047559
    %v543 = vsel %vm542, %v457, %v541
    %v544 = vsel %vm530, %v471, %v464
    %v545 = vsel %vm532, %v478, %v544
    %v546 = vsel %vm534, %v485, %v545
    %v547 = vsel %vm536, %v492, %v546
    %v548 = vsel %vm538, %v499, %v547
    %v549 = vsel %vm540, %v506, %v548
    %v550 = vsel %vm542, %v513, %v549
    %553 = vst.msk [vmem:[#allocation5] sm:$0xff] %vm65, %v543
    %554 = vst.msk [vmem:[#allocation5 + $0x8] sm:$0xff] %vm65, %v550
    // Predicated region
    $region14: #{tpu_custom_call.1} parent=1 // pred_check
      _
    $region15: #{tpu_custom_call.1} parent=1 // pred_check_branch
      %556 = sbr.rel (0) target = $region17
    $region16: #{tpu_custom_call.1} parent=1 // pred_region
      %s558 = ssub.s32 256, 256
      %559 = vsyncadd [#allocation4], %s558
      %s560 = sshll.u32 [#allocation5], 4
      %s561 = int_to_ptr.vmem [resolvable:$true] %s560
      %566 = dma.vmem_to_hbm [thread:$0]  %s561, 256, %s2, [#allocation4], 128, 128, 8
    $region17: #{tpu_custom_call.1} parent=1 // pred_fallthru
      _
    // Predicated region
    $region18: #{tpu_custom_call.1} parent=1 // pred_check
      _
    $region19: #{tpu_custom_call.1} parent=1 // pred_check_branch
      %568 = sbr.rel (0) target = $region21
    $region20: #{tpu_custom_call.1} parent=1 // pred_region
      %569 = dma.done [#allocation4], 256
    $region21: #{tpu_custom_call.1} parent=1 // pred_fallthru
      _
    %570 = vsyncpa [#allocation3], 1
    %571 = vsyncpa [#allocation4], 1

</llo_original>
